<compile_context>
chip_gen: v6e
topology: v6e:2x2x1
jax: 0.10.0
libtpu: 0.0.40
codegen_flags: <defaults>
</compile_context>

<pallas_src>
import functools

import jax
import jax.numpy as jnp
from jax.experimental import pallas as pl
from jax.experimental.pallas import tpu as pltpu


# ----------------------------------------------------------------------------
# Fused MixStyle mixing kernel: stats(x), stats(x[perm]), interpolate, rewrite
# ----------------------------------------------------------------------------
def _make_mix_kernel(eps):
    def kernel(perm_ref, lam_ref, x_ref, xp_ref, o_ref):
        del perm_ref                     # only used inside the index_maps
        b = pl.program_id(0)

        x = x_ref[0].astype(jnp.float32)     # (C, L) this sample
        xp = xp_ref[0].astype(jnp.float32)   # (C, L) permuted partner sample

        n = x.shape[0] * x.shape[1]
        inv_n = 1.0 / n
        inv_nm1 = 1.0 / (n - 1)               # torch.var default: unbiased

        mu = jnp.sum(x, axis=None, keepdims=True) * inv_n          # (1, 1)
        var = jnp.sum((x - mu) ** 2, axis=None, keepdims=True) * inv_nm1
        sigma = jnp.sqrt(var + eps)

        mu_p = jnp.sum(xp, axis=None, keepdims=True) * inv_n
        var_p = jnp.sum((xp - mu_p) ** 2, axis=None, keepdims=True) * inv_nm1
        sigma_p = jnp.sqrt(var_p + eps)

        lam = lam_ref[b]                                           # scalar f32
        mu_mix = lam * mu + (1.0 - lam) * mu_p
        sigma_mix = lam * sigma + (1.0 - lam) * sigma_p

        # (x - mu)/sigma * sigma_mix + mu_mix  ==  x*scale + shift
        scale = sigma_mix / sigma
        shift = mu_mix - mu * scale
        o_ref[0] = (x * scale + shift).astype(o_ref.dtype)

    return kernel


@functools.partial(jax.jit, static_argnames=("eps",))
def mixstyle_mix(x, perm, lam, *, eps=1e-6):
    """The mixing branch of MixStyle.forward (training, coin <= p).

    x: (B, C, L) f32, perm: (B,) int32, lam: (B,) f32 -> (B, C, L) f32.
    """
    B, C, L = x.shape
    grid_spec = pltpu.PrefetchScalarGridSpec(
        num_scalar_prefetch=1,                 # perm table -> SMEM, drives xp index_map
        grid=(B,),
        in_specs=[
            pl.BlockSpec(memory_space=pltpu.MemorySpace.SMEM),              # lam (B,)
            pl.BlockSpec((1, C, L), lambda b, perm_ref: (b, 0, 0)),         # x[b]
            pl.BlockSpec((1, C, L), lambda b, perm_ref: (perm_ref[b], 0, 0)),  # x[perm[b]]
        ],
        out_specs=pl.BlockSpec((1, C, L), lambda b, perm_ref: (b, 0, 0)),
    )
    return pl.pallas_call(
        _make_mix_kernel(eps),
        out_shape=jax.ShapeDtypeStruct((B, C, L), x.dtype),
        grid_spec=grid_spec,
        compiler_params=pltpu.CompilerParams(
            dimension_semantics=("parallel",)),
    )(perm, lam, x, x)


# ----------------------------------------------------------------------------
# Full MixStyle.forward wrapper (host randomness via jax.random)
# ----------------------------------------------------------------------------
def _mixstyle_perm_and_lam(key, batch_size, alpha):
    """Reproduce MixStyle's Beta sample + half-shuffled reversed permutation."""
    k_beta, k_b, k_a = jax.random.split(key, 3)
    lam = jax.random.beta(k_beta, alpha, alpha, (batch_size,)).astype(jnp.float32)
    rev = jnp.arange(batch_size - 1, -1, -1, dtype=jnp.int32)
    half = batch_size // 2
    perm_b = jax.random.permutation(k_b, rev[:half])
    perm_a = jax.random.permutation(k_a, rev[half:])
    perm = jnp.concatenate([perm_b, perm_a]).astype(jnp.int32)
    return perm, lam


def mixstyle_forward(x, key, *, training=True, p=0.5, alpha=0.1, eps=1e-6):
    """MixStyle.forward.  x: (B, C, L).  Identity in eval mode."""
    if not training:
        return x
    B = x.shape[0]
    assert B % 2 == 0, "MixStyle's half-permutation requires an even batch."
    k_coin, k_mix = jax.random.split(key)
    perm, lam = _mixstyle_perm_and_lam(k_mix, B, alpha)
    mixed = mixstyle_mix(x, perm, lam, eps=eps)
    # `if random.random() > self.p: return x`
    coin = jax.random.uniform(k_coin, ())
    return jnp.where(coin > p, x, mixed)


# ----------------------------------------------------------------------------
# Pure-JAX reference for the mixing branch (correctness check)
# ----------------------------------------------------------------------------
def mixstyle_mix_ref(x, perm, lam, eps=1e-6):
    mu = jnp.mean(x, axis=(1, 2), keepdims=True)
    var = jnp.var(x, axis=(1, 2), keepdims=True, ddof=1)   # unbiased, like torch
    sigma = jnp.sqrt(var + eps)
    x_normed = (x - mu) / sigma
    lam3 = lam[:, None, None]
    mu_mix = mu * lam3 + mu[perm] * (1.0 - lam3)
    sigma_mix = sigma * lam3 + sigma[perm] * (1.0 - lam3)
    return x_normed * sigma_mix + mu_mix


# ----------------------------------------------------------------------------
if __name__ == "__main__":
    key = jax.random.PRNGKey(0)
    k_x, k_mix, k_fwd = jax.random.split(key, 3)

    B, C, L = 4, 16, 128
    x = jax.random.normal(k_x, (B, C, L), jnp.float32)

    # --- exercise the fused mixing kernel directly and check vs pure-JAX ref ---
    perm, lam = _mixstyle_perm_and_lam(k_mix, B, alpha=0.1)
    out_mix = jax.block_until_ready(mixstyle_mix(x, perm, lam, eps=1e-6))
    ref_mix = mixstyle_mix_ref(x, perm, lam, eps=1e-6)

    assert out_mix.shape == (B, C, L), out_mix.shape
    assert bool(jnp.all(jnp.isfinite(out_mix)))
    assert bool(jnp.allclose(out_mix, ref_mix, rtol=1e-5, atol=1e-5)), (
        float(jnp.max(jnp.abs(out_mix - ref_mix))))

    # --- full forward: training mode (stochastic) and eval mode (identity) ---
    out_train = jax.block_until_ready(
        mixstyle_forward(x, k_fwd, training=True, p=0.5, alpha=0.1))
    assert out_train.shape == x.shape

    out_eval = mixstyle_forward(x, k_fwd, training=False)
    assert bool(jnp.array_equal(out_eval, x))

    print("KERNEL_OK")
</pallas_src>

<mosaic_0001>
module attributes {stable_mosaic.version = 11 : i64} {
  func.func @kernel(%arg0: i32, %arg1: memref<4xi32, #tpu.memory_space<smem>>, %arg2: memref<4xf32, #tpu.memory_space<smem>>, %arg3: memref<1x16x128xf32, #tpu.memory_space<vmem>>, %arg4: memref<1x16x128xf32, #tpu.memory_space<vmem>>, %arg5: memref<1x16x128xf32, #tpu.memory_space<vmem>>) attributes {dimension_semantics = [#tpu.dimension_semantics<parallel>], iteration_bounds = array<i64: 4>, scalar_prefetch = 1 : i64, scratch_operands = 0 : i64, tpu.core_type = #tpu.core_type<tc>, window_params = [{transform_indices = @transform_0, window_bounds = array<i64: 4>}, {transform_indices = @transform_1, window_bounds = array<i64: 1, 16, 128>}, {transform_indices = @transform_2, window_bounds = array<i64: 1, 16, 128>}, {transform_indices = @transform_3, window_bounds = array<i64: 1, 16, 128>}]} {
    %c0 = arith.constant 0 : index
    %c0_0 = arith.constant 0 : index
    %c0_1 = arith.constant 0 : index
    %0 = vector.load %arg3[%c0, %c0_0, %c0_1] : memref<1x16x128xf32, #tpu.memory_space<vmem>>, vector<1x16x128xf32>
    %1 = vector.shape_cast %0 : vector<1x16x128xf32> to vector<16x128xf32>
    %c0_2 = arith.constant 0 : index
    %c0_3 = arith.constant 0 : index
    %c0_4 = arith.constant 0 : index
    %2 = vector.load %arg4[%c0_2, %c0_3, %c0_4] : memref<1x16x128xf32, #tpu.memory_space<vmem>>, vector<1x16x128xf32>
    %3 = vector.shape_cast %2 : vector<1x16x128xf32> to vector<16x128xf32>
    %4 = vector.shape_cast %1 : vector<16x128xf32> to vector<1x16x128xf32>
    %cst = arith.constant dense<0.000000e+00> : vector<1xf32>
    %5 = vector.multi_reduction <add>, %4, %cst [1, 2] : vector<1x16x128xf32> to vector<1xf32>
    %6 = vector.shape_cast %5 : vector<1xf32> to vector<1x1x1xf32>
    %7 = vector.extract %6[0, 0, 0] : f32 from vector<1x1x1xf32>
    %8 = vector.broadcast %7 : f32 to vector<1x1xf32>
    %cst_5 = arith.constant 4.8828125E-4 : f32
    %9 = vector.broadcast %cst_5 : f32 to vector<1x1xf32>
    %10 = arith.mulf %8, %9 : vector<1x1xf32>
    %11 = vector.broadcast %10 : vector<1x1xf32> to vector<16x128xf32>
    %12 = arith.subf %1, %11 : vector<16x128xf32>
    %13 = arith.mulf %12, %12 : vector<16x128xf32>
    %14 = vector.shape_cast %13 : vector<16x128xf32> to vector<1x16x128xf32>
    %cst_6 = arith.constant dense<0.000000e+00> : vector<1xf32>
    %15 = vector.multi_reduction <add>, %14, %cst_6 [1, 2] : vector<1x16x128xf32> to vector<1xf32>
    %16 = vector.shape_cast %15 : vector<1xf32> to vector<1x1x1xf32>
    %17 = vector.extract %16[0, 0, 0] : f32 from vector<1x1x1xf32>
    %18 = vector.broadcast %17 : f32 to vector<1x1xf32>
    %cst_7 = arith.constant 4.88519785E-4 : f32
    %19 = vector.broadcast %cst_7 : f32 to vector<1x1xf32>
    %20 = arith.mulf %18, %19 : vector<1x1xf32>
    %cst_8 = arith.constant 9.99999997E-7 : f32
    %21 = vector.broadcast %cst_8 : f32 to vector<1x1xf32>
    %22 = arith.addf %20, %21 : vector<1x1xf32>
    %23 = math.sqrt %22 : vector<1x1xf32>
    %24 = vector.shape_cast %3 : vector<16x128xf32> to vector<1x16x128xf32>
    %cst_9 = arith.constant dense<0.000000e+00> : vector<1xf32>
    %25 = vector.multi_reduction <add>, %24, %cst_9 [1, 2] : vector<1x16x128xf32> to vector<1xf32>
    %26 = vector.shape_cast %25 : vector<1xf32> to vector<1x1x1xf32>
    %27 = vector.extract %26[0, 0, 0] : f32 from vector<1x1x1xf32>
    %28 = vector.broadcast %27 : f32 to vector<1x1xf32>
    %cst_10 = arith.constant 4.8828125E-4 : f32
    %29 = vector.broadcast %cst_10 : f32 to vector<1x1xf32>
    %30 = arith.mulf %28, %29 : vector<1x1xf32>
    %31 = vector.broadcast %30 : vector<1x1xf32> to vector<16x128xf32>
    %32 = arith.subf %3, %31 : vector<16x128xf32>
    %33 = arith.mulf %32, %32 : vector<16x128xf32>
    %34 = vector.shape_cast %33 : vector<16x128xf32> to vector<1x16x128xf32>
    %cst_11 = arith.constant dense<0.000000e+00> : vector<1xf32>
    %35 = vector.multi_reduction <add>, %34, %cst_11 [1, 2] : vector<1x16x128xf32> to vector<1xf32>
    %36 = vector.shape_cast %35 : vector<1xf32> to vector<1x1x1xf32>
    %37 = vector.extract %36[0, 0, 0] : f32 from vector<1x1x1xf32>
    %38 = vector.broadcast %37 : f32 to vector<1x1xf32>
    %cst_12 = arith.constant 4.88519785E-4 : f32
    %39 = vector.broadcast %cst_12 : f32 to vector<1x1xf32>
    %40 = arith.mulf %38, %39 : vector<1x1xf32>
    %cst_13 = arith.constant 9.99999997E-7 : f32
    %41 = vector.broadcast %cst_13 : f32 to vector<1x1xf32>
    %42 = arith.addf %40, %41 : vector<1x1xf32>
    %43 = math.sqrt %42 : vector<1x1xf32>
    %44 = arith.index_cast %arg0 : i32 to index
    %45 = memref.load %arg2[%44] : memref<4xf32, #tpu.memory_space<smem>>
    %46 = vector.broadcast %45 : f32 to vector<1x1xf32>
    %47 = arith.mulf %46, %10 : vector<1x1xf32>
    %cst_14 = arith.constant 1.000000e+00 : f32
    %48 = arith.subf %cst_14, %45 : f32
    %49 = vector.broadcast %48 : f32 to vector<1x1xf32>
    %50 = arith.mulf %49, %30 : vector<1x1xf32>
    %51 = arith.addf %47, %50 : vector<1x1xf32>
    %52 = vector.broadcast %45 : f32 to vector<1x1xf32>
    %53 = arith.mulf %52, %23 : vector<1x1xf32>
    %cst_15 = arith.constant 1.000000e+00 : f32
    %54 = arith.subf %cst_15, %45 : f32
    %55 = vector.broadcast %54 : f32 to vector<1x1xf32>
    %56 = arith.mulf %55, %43 : vector<1x1xf32>
    %57 = arith.addf %53, %56 : vector<1x1xf32>
    %58 = arith.divf %57, %23 : vector<1x1xf32>
    %59 = arith.mulf %10, %58 : vector<1x1xf32>
    %60 = arith.subf %51, %59 : vector<1x1xf32>
    %61 = vector.broadcast %58 : vector<1x1xf32> to vector<16x128xf32>
    %62 = arith.mulf %1, %61 : vector<16x128xf32>
    %63 = vector.broadcast %60 : vector<1x1xf32> to vector<16x128xf32>
    %64 = arith.addf %62, %63 : vector<16x128xf32>
    %c0_16 = arith.constant 0 : index
    %c0_17 = arith.constant 0 : index
    %c0_18 = arith.constant 0 : index
    %65 = vector.load %arg5[%c0_16, %c0_17, %c0_18] : memref<1x16x128xf32, #tpu.memory_space<vmem>>, vector<1x16x128xf32>
    %66 = vector.shape_cast %65 : vector<1x16x128xf32> to vector<16x128xf32>
    %67 = vector.shape_cast %64 : vector<16x128xf32> to vector<1x16x128xf32>
    tpu.vector_store %arg5[%c0_16, %c0_17, %c0_18], %67 {strides = array<i32>} : memref<1x16x128xf32, #tpu.memory_space<vmem>>, vector<1x16x128xf32>,
    return
  }
  func.func @transform_0(%arg0: i32, %arg1: memref<4xi32, #tpu.memory_space<smem>>) -> i32 {
    %c0_i32 = arith.constant 0 : i32
    %c0_i32_0 = arith.constant 0 : i32
    return %c0_i32 : i32
  }
  func.func @transform_1(%arg0: i32, %arg1: memref<4xi32, #tpu.memory_space<smem>>) -> (i32, i32, i32) {
    %c0_i32 = arith.constant 0 : i32
    %c0_i32_0 = arith.constant 0 : i32
    %c0_i32_1 = arith.constant 0 : i32
    return %arg0, %c0_i32, %c0_i32_0 : i32, i32, i32
  }
  func.func @transform_2(%arg0: i32, %arg1: memref<4xi32, #tpu.memory_space<smem>>) -> (i32, i32, i32) {
    %0 = arith.index_cast %arg0 : i32 to index
    %1 = memref.load %arg1[%0] : memref<4xi32, #tpu.memory_space<smem>>
    %c0_i32 = arith.constant 0 : i32
    %c0_i32_0 = arith.constant 0 : i32
    %c0_i32_1 = arith.constant 0 : i32
    return %1, %c0_i32, %c0_i32_0 : i32, i32, i32
  }
  func.func @transform_3(%arg0: i32, %arg1: memref<4xi32, #tpu.memory_space<smem>>) -> (i32, i32, i32) {
    %c0_i32 = arith.constant 0 : i32
    %c0_i32_0 = arith.constant 0 : i32
    %c0_i32_1 = arith.constant 0 : i32
    return %arg0, %c0_i32, %c0_i32_0 : i32, i32, i32
  }
}

</mosaic_0001>

<llo_original>
// kernel: mixstyle_mix.1
$region0: #{mixstyle_mix.1}
  #allocation0 [shape = 'u32[]', space=smem, size = 0x4, offset = 0x4, fixed_abs, tag = 'smem constant byte address 0x4 - core index']
  #allocation1 [shape = 'u32[144,128]{1,0:T(1,128)}', space=vmem, size = 0x12000, scoped, tag = 'internal scratch']
  #allocation2 [shape = 's32[1]{0}', space=sflag, size = 0x4, scoped, tag = 'scoped memory for mixstyle_mix.1']
  #allocation3 [shape = 'u8[512]{0}', space=smem, size = 0x200, scoped, tag = 'prefetched SMEM operand 0']
  %s0 = inlined_call_operand.vmem [shape: s32[4], index: 0, kind: input, shape index: {}]
  %s1 = inlined_call_operand.vmem [shape: f32[4], index: 1, kind: input, shape index: {}]
  %s2 = inlined_call_operand.hbm [shape: f32[4,16,128], index: 2, kind: input, shape index: {}, may-alias: {2,3}]
  %s3 = inlined_call_operand.hbm [shape: f32[4,16,128], index: 3, kind: input, shape index: {}, may-alias: {2,3}]
  %s4 = inlined_call_operand.hbm [shape: f32[4,16,128], index: 4, kind: output, shape index: {}]
  %s5 = sld [smem:[#allocation0]]
  $region57: #{mixstyle_mix.1} parent=0
    _
  %s7 = ssub.s32 1, %s5
  %s8 = scalar_select 0, %s7, %s5
  %s9 = sshll.u32 %s0, 4
  %s10 = int_to_ptr.vmem [resolvable:$true] %s9
  %12 = dma.vmem_to_smem %s10, 16, [#allocation3], [#allocation2]
  %13 = dma.done [#allocation2], 16
  %14 = sfence
  $region1: #{mixstyle_mix.1} parent=0
    #allocation4 [shape = 'u8[512]{0}', space=smem, size = 0x200, scoped, tag = 'input window, operand 1, single buffered']
    #allocation5 [shape = 's32[2]{0}', space=sflag, size = 0x8, scoped, tag = 'scoped memory for mixstyle_mix.1']
    #allocation6 [shape = 's32[2]{0}', space=sflag, size = 0x8, scoped, tag = 'scoped memory for mixstyle_mix.1']
    #allocation7 [shape = 's32[2]{0}', space=sflag, size = 0x8, scoped, tag = 'scoped memory for mixstyle_mix.1']
    #allocation8 [shape = 'u8[16384]{0}', space=vmem, size = 0x4000, scoped, tag = 'input window, operand 2']
    #allocation9 [shape = 'u8[16384]{0}', space=vmem, size = 0x4000, scoped, tag = 'input window, operand 3']
    #allocation10 [shape = 's32[2]{0}', space=sflag, size = 0x8, scoped, tag = 'scoped memory for mixstyle_mix.1']
    #allocation11 [shape = 'u8[16384]{0}', space=vmem, size = 0x4000, scoped, tag = 'output window, operand 0']
    %15 = vsyncpa [#allocation7], 0
    %16 = vsyncpa [#allocation5], 0
    %s17 = scalar_lea.sflag [#allocation5], 1
    %18 = vsyncpa %s17, 0
    %19 = vsyncpa [#allocation10], 0
    %s20 = scalar_lea.sflag [#allocation10], 1
    %21 = vsyncpa %s20, 0
    %22 = vsyncpa [#allocation6], 0
    %s23 = scalar_lea.sflag [#allocation6], 1
    %24 = vsyncpa %s23, 0
    loop: start=0, step=1, limit=6
    $region2: #{mixstyle_mix.1} parent=1 // loop_pre_header
      _
    $region3: #{mixstyle_mix.1} parent=1 // loop_header
      %s26 = sphi 0, %s30
      %p27 = scmp.ge.s32.totalorder %s26, 6
      %s34 = sphi 0, %s34
      %s36 = sphi 0, %s34
      %s37 = sphi 0, %s36
      %s51 = sphi 0, %s37
      %s57 = sphi 0, %s59
      %s60 = sphi 0, %s57
      %s61 = sphi 0, %s60
      %s77 = sphi 0, %s61
      %s85 = sphi 0, %s87
      %s88 = sphi 0, %s85
      %s89 = sphi 0, %s88
      %s105 = sphi 0, %s89
      %s111 = sphi 0, %s113
      %s114 = sphi 0, %s111
      %s115 = sphi 0, %s114
      %s131 = sphi 0, %s115
    $region4: #{mixstyle_mix.1} parent=1 // loop_header_branch
      %29 = sbr.rel (%p27) target = $region8
    $region5: #{mixstyle_mix.1} parent=1 // loop_body
      %s31 = ssub.s32 %s26, 1
      %s32 = ssub.s32 %s26, 2
      %s33 = sadd.s32 %s26, 1
      %s35 = sadd.s32 %s34, 1
      %p38 = scmp.eq.s32.totalorder %s26, 3
      %p39 = scmp.ne.s32.totalorder %s34, %s36
      %p40 = scmp.eq.s32.totalorder %s26, 0
      %p41 = por %p39, %p40
      %p42 = scmp.ne.s32.totalorder %s34, %s36
      %p43 = scmp.eq.s32.totalorder %s31, 3
      %p44 = por %p42, %p43
      %p45 = scmp.ne.s32.totalorder %s36, %s37
      %p46 = scmp.eq.s32.totalorder %s31, 0
      %p47 = por %p45, %p46
      %p48 = scmp.ne.s32.totalorder %s36, %s37
      %p49 = scmp.eq.s32.totalorder %s32, 3
      %p50 = por %p48, %p49
      %p52 = scmp.ne.s32.totalorder %s37, %s51
      %p53 = scmp.eq.s32.totalorder %s32, 0
      %p54 = por %p52, %p53
      %s55 = ssub.s32 %s26, %s33
      %p56 = scmp.eq.s32.totalorder %s55, 0
      %s58 = sadd.s32 %s57, 1
      %s59 = scalar_select %p56, %s57, %s58
      %p62 = pneg %p56
      %p63 = scmp.eq.s32.totalorder %s26, 3
      %p64 = por %p62, %p63
      %p65 = scmp.ne.s32.totalorder %s57, %s60
      %p66 = scmp.eq.s32.totalorder %s26, 0
      %p67 = por %p65, %p66
      %p68 = scmp.ne.s32.totalorder %s57, %s60
      %p69 = scmp.eq.s32.totalorder %s31, 3
      %p70 = por %p68, %p69
      %p71 = scmp.ne.s32.totalorder %s60, %s61
      %p72 = scmp.eq.s32.totalorder %s31, 0
      %p73 = por %p71, %p72
      %p74 = scmp.ne.s32.totalorder %s60, %s61
      %p75 = scmp.eq.s32.totalorder %s32, 3
      %p76 = por %p74, %p75
      %p78 = scmp.ne.s32.totalorder %s61, %s77
      %p79 = scmp.eq.s32.totalorder %s32, 0
      %p80 = por %p78, %p79
      %s81 = sld [smem:[#allocation3 + %s26]]
      %s82 = sld [smem:[#allocation3 + %s33]]
      %s83 = ssub.s32 %s81, %s82
      %p84 = scmp.eq.s32.totalorder %s83, 0
      %s86 = sadd.s32 %s85, 1
      %s87 = scalar_select %p84, %s85, %s86
      %p90 = pneg %p84
      %p91 = scmp.eq.s32.totalorder %s26, 3
      %p92 = por %p90, %p91
      %p93 = scmp.ne.s32.totalorder %s85, %s88
      %p94 = scmp.eq.s32.totalorder %s26, 0
      %p95 = por %p93, %p94
      %p96 = scmp.ne.s32.totalorder %s85, %s88
      %p97 = scmp.eq.s32.totalorder %s31, 3
      %p98 = por %p96, %p97
      %p99 = scmp.ne.s32.totalorder %s88, %s89
      %p100 = scmp.eq.s32.totalorder %s31, 0
      %p101 = por %p99, %p100
      %p102 = scmp.ne.s32.totalorder %s88, %s89
      %p103 = scmp.eq.s32.totalorder %s32, 3
      %p104 = por %p102, %p103
      %p106 = scmp.ne.s32.totalorder %s89, %s105
      %p107 = scmp.eq.s32.totalorder %s32, 0
      %p108 = por %p106, %p107
      %s109 = ssub.s32 %s26, %s33
      %p110 = scmp.eq.s32.totalorder %s109, 0
      %s112 = sadd.s32 %s111, 1
      %s113 = scalar_select %p110, %s111, %s112
      %p116 = pneg %p110
      %p117 = scmp.eq.s32.totalorder %s26, 3
      %p118 = por %p116, %p117
      %p119 = scmp.ne.s32.totalorder %s111, %s114
      %p120 = scmp.eq.s32.totalorder %s26, 0
      %p121 = por %p119, %p120
      %p122 = scmp.ne.s32.totalorder %s111, %s114
      %p123 = scmp.eq.s32.totalorder %s31, 3
      %p124 = por %p122, %p123
      %p125 = scmp.ne.s32.totalorder %s114, %s115
      %p126 = scmp.eq.s32.totalorder %s31, 0
      %p127 = por %p125, %p126
      %p128 = scmp.ne.s32.totalorder %s114, %s115
      %p129 = scmp.eq.s32.totalorder %s32, 3
      %p130 = por %p128, %p129
      %p132 = scmp.ne.s32.totalorder %s115, %s131
      %p133 = scmp.eq.s32.totalorder %s32, 0
      %p134 = por %p132, %p133
      %p135 = scmp.le.s32.totalorder 1, %s26
      %p136 = scmp.lt.s32.totalorder %s26, 5
      %p137 = pnand %p135, %p136
      %p138 = pneg %p137
      // Predicated region
      $region9: #{mixstyle_mix.1} parent=5 // pred_check
        _
      $region10: #{mixstyle_mix.1} parent=5 // pred_check_branch
        %140 = sbr.rel (%p137) target = $region12
      $region11: #{mixstyle_mix.1} parent=5 // pred_region
        %s141 = ssub.s32 %s26, 1
        // Predicated region
        $region13: #{mixstyle_mix.1} parent=11 // pred_check
          %p142 = pneg %p47
        $region14: #{mixstyle_mix.1} parent=11 // pred_check_branch
          %144 = sbr.rel (%p142) target = $region16
        $region15: #{mixstyle_mix.1} parent=11 // pred_region
          %s146 = ssub.s32 16, 16
          %147 = vsyncadd [#allocation7], %s146
          %s149 = sshll.u32 %s1, 4
          %s150 = int_to_ptr.vmem [resolvable:$true] %s149
          %152 = dma.vmem_to_smem %s150, 16, [#allocation4], [#allocation7]
        $region16: #{mixstyle_mix.1} parent=11 // pred_fallthru
          _
      $region12: #{mixstyle_mix.1} parent=5 // pred_fallthru
        _
      %p153 = scmp.lt.s32.totalorder %s26, 4
      // Predicated region
      $region17: #{mixstyle_mix.1} parent=5 // pred_check
        %p154 = pneg %p153
      $region18: #{mixstyle_mix.1} parent=5 // pred_check_branch
        %156 = sbr.rel (%p154) target = $region20
      $region19: #{mixstyle_mix.1} parent=5 // pred_region
        // Predicated region
        $region21: #{mixstyle_mix.1} parent=19 // pred_check
          %p157 = pneg %p67
        $region22: #{mixstyle_mix.1} parent=19 // pred_check_branch
          %159 = sbr.rel (%p157) target = $region24
        $region23: #{mixstyle_mix.1} parent=19 // pred_region
          %s160 = sand.u32 %s57, 1
          %s161 = scalar_lea.sflag [#allocation5], %s160
          %s162 = sand.u32 %s57, 1
          %s163 = smul.addr %s162, 16
          %s164 = scalar_lea.vmem [#allocation8], %s163
          %s166 = ssub.s32 256, 256
          %167 = vsyncadd %s161, %s166
          %s168 = smul.addr %s26, 2
          %s169 = smul.addr %s168, 128
          %s170 = scalar_lea.hbm %s2, %s169
          %s171 = sshll.u32 %s164, 4
          %s172 = int_to_ptr.vmem [resolvable:$true] %s171
          %177 = dma.hbm_to_vmem [thread:$0]  %s170, 256, %s172, %s161, 128, 128, 8
        $region24: #{mixstyle_mix.1} parent=19 // pred_fallthru
          _
        // Predicated region
        $region25: #{mixstyle_mix.1} parent=19 // pred_check
          %p178 = pneg %p95
        $region26: #{mixstyle_mix.1} parent=19 // pred_check_branch
          %180 = sbr.rel (%p178) target = $region28
        $region27: #{mixstyle_mix.1} parent=19 // pred_region
          %s181 = sand.u32 %s85, 1
          %s182 = scalar_lea.sflag [#allocation10], %s181
          %s183 = sand.u32 %s85, 1
          %s184 = smul.addr %s183, 16
          %s185 = scalar_lea.vmem [#allocation9], %s184
          %s186 = sld [smem:[#allocation3 + %s26]]
          %s188 = ssub.s32 256, 256
          %189 = vsyncadd %s182, %s188
          %s190 = smul.addr %s186, 2
          %s191 = smul.addr %s190, 128
          %s192 = scalar_lea.hbm %s3, %s191
          %s193 = sshll.u32 %s185, 4
          %s194 = int_to_ptr.vmem [resolvable:$true] %s193
          %199 = dma.hbm_to_vmem [thread:$0]  %s192, 256, %s194, %s182, 128, 128, 8
        $region28: #{mixstyle_mix.1} parent=19 // pred_fallthru
          _
      $region20: #{mixstyle_mix.1} parent=5 // pred_fallthru
        _
      %p200 = scmp.le.s32.totalorder 1, %s26
      %p201 = scmp.lt.s32.totalorder %s26, 5
      %p202 = pnand %p200, %p201
      %p203 = pneg %p202
      // Predicated region
      $region29: #{mixstyle_mix.1} parent=5 // pred_check
        _
      $region30: #{mixstyle_mix.1} parent=5 // pred_check_branch
        %205 = sbr.rel (%p202) target = $region32
      $region31: #{mixstyle_mix.1} parent=5 // pred_region
        %s206 = ssub.s32 %s26, 1
        // Predicated region
        $region33: #{mixstyle_mix.1} parent=31 // pred_check
          %p207 = pneg %p47
        $region34: #{mixstyle_mix.1} parent=31 // pred_check_branch
          %209 = sbr.rel (%p207) target = $region36
        $region35: #{mixstyle_mix.1} parent=31 // pred_region
          %210 = dma.done [#allocation7], 16
        $region36: #{mixstyle_mix.1} parent=31 // pred_fallthru
          _
        %s211 = sand.u32 %s60, 1
        %s212 = scalar_lea.sflag [#allocation5], %s211
        %s213 = sand.u32 %s60, 1
        %s214 = smul.addr %s213, 16
        %s215 = scalar_lea.vmem [#allocation8], %s214
        // Predicated region
        $region37: #{mixstyle_mix.1} parent=31 // pred_check
          %p216 = pneg %p73
        $region38: #{mixstyle_mix.1} parent=31 // pred_check_branch
          %218 = sbr.rel (%p216) target = $region40
        $region39: #{mixstyle_mix.1} parent=31 // pred_region
          %219 = dma.done %s212, 256
        $region40: #{mixstyle_mix.1} parent=31 // pred_fallthru
          _
        %s220 = sand.u32 %s88, 1
        %s221 = scalar_lea.sflag [#allocation10], %s220
        %s222 = sand.u32 %s88, 1
        %s223 = smul.addr %s222, 16
        %s224 = scalar_lea.vmem [#allocation9], %s223
        // Predicated region
        $region41: #{mixstyle_mix.1} parent=31 // pred_check
          %p225 = pneg %p101
        $region42: #{mixstyle_mix.1} parent=31 // pred_check_branch
          %227 = sbr.rel (%p225) target = $region44
        $region43: #{mixstyle_mix.1} parent=31 // pred_region
          %228 = dma.done %s221, 256
        $region44: #{mixstyle_mix.1} parent=31 // pred_fallthru
          _
        %229 = sfence
        %p230 = pneg %p47
        %p231 = pneg %p44
        %s232 = sand.u32 %s60, 1
        %s233 = scalar_lea.sflag [#allocation5], %s232
        %s234 = sand.u32 %s60, 1
        %s235 = smul.addr %s234, 16
        %s236 = scalar_lea.vmem [#allocation8], %s235
        %p237 = pneg %p73
        %p238 = pneg %p70
        %s239 = sand.u32 %s88, 1
        %s240 = scalar_lea.sflag [#allocation10], %s239
        %s241 = sand.u32 %s88, 1
        %s242 = smul.addr %s241, 16
        %s243 = scalar_lea.vmem [#allocation9], %s242
        %p244 = pneg %p101
        %p245 = pneg %p98
        %p246 = pneg %p127
        %p247 = pneg %p124
        %s248 = sand.u32 %s114, 1
        %s249 = scalar_lea.sflag [#allocation6], %s248
        %s250 = sand.u32 %s114, 1
        %s251 = smul.addr %s250, 16
        %s252 = scalar_lea.vmem [#allocation11], %s251
        %s253 = sld [smem:[#allocation3 + %s31]]
        %v254 = vld [vmem:[%s215] sm:$0xff]
        %v255 = vld [vmem:[%s215 + $0x8] sm:$0xff]
        %v256 = vld [vmem:[%s224] sm:$0xff]
        %v257 = vld [vmem:[%s224 + $0x8] sm:$0xff]
        %v258 = vadd.f32 %v254, %v255
        %259 = vadd.xlane.f32.xlu0 %v258
        %v260 = vpop.xlane.xlu0 %259
        %v261 = vrot.slane %v260, 4
        %v262 = vadd.f32 %v260, %v261
        %v263 = vrot.slane %v262, 2
        %v264 = vadd.f32 %v262, %v263
        %v265 = vrot.slane %v264, 1
        %v266 = vadd.f32 %v264, %v265
        %s267 = vtos %v266
        %v268 = vstv %s267
        %v269 = vmul.f32 %v268, 0.00048828125
        %v270 = vsub.f32 %v254, %v269
        %v271 = vsub.f32 %v255, %v269
        %v272 = vmul.f32 %v270, %v270
        %v273 = vmul.f32 %v271, %v271
        %v274 = vadd.f32 %v272, %v273
        %275 = vadd.xlane.f32.xlu0 %v274
        %v276 = vpop.xlane.xlu0 %275
        %v277 = vrot.slane %v276, 4
        %v278 = vadd.f32 %v276, %v277
        %v279 = vrot.slane %v278, 2
        %v280 = vadd.f32 %v278, %v279
        %v281 = vrot.slane %v280, 1
        %v282 = vadd.f32 %v280, %v281
        %s283 = vtos %v282
        %v284 = vstv %s283
        %v285 = vmul.f32 %v284, 0.0004885198
        %v286 = vadd.f32 %v285, 1e-06
        %v287 = vrsqrt.pop %v286
        %v288 = vmul.f32 %v286, %v287
        %vm289 = vcmp.eq.f32.partialorder %v286, inf
        %v290 = vsel %vm289, %v286, %v288
        %vm291 = vcmp.eq.f32.partialorder %v286, 0.0
        %v292 = vand.u32 %v286, 2147483648
        %v293 = vsel %vm291, %v292, %v290
        %v294 = vadd.f32 %v256, %v257
        %295 = vadd.xlane.f32.xlu0 %v294
        %v296 = vpop.xlane.xlu0 %295
        %v297 = vrot.slane %v296, 4
        %v298 = vadd.f32 %v296, %v297
        %v299 = vrot.slane %v298, 2
        %v300 = vadd.f32 %v298, %v299
        %v301 = vrot.slane %v300, 1
        %v302 = vadd.f32 %v300, %v301
        %s303 = vtos %v302
        %v304 = vstv %s303
        %v305 = vmul.f32 %v304, 0.00048828125
        %v306 = vsub.f32 %v256, %v305
        %v307 = vsub.f32 %v257, %v305
        %v308 = vmul.f32 %v306, %v306
        %v309 = vmul.f32 %v307, %v307
        %v310 = vadd.f32 %v308, %v309
        %311 = vadd.xlane.f32.xlu0 %v310
        %v312 = vpop.xlane.xlu0 %311
        %v313 = vrot.slane %v312, 4
        %v314 = vadd.f32 %v312, %v313
        %v315 = vrot.slane %v314, 2
        %v316 = vadd.f32 %v314, %v315
        %v317 = vrot.slane %v316, 1
        %v318 = vadd.f32 %v316, %v317
        %s319 = vtos %v318
        %v320 = vstv %s319
        %v321 = vmul.f32 %v320, 0.0004885198
        %v322 = vadd.f32 %v321, 1e-06
        %v323 = vrsqrt.pop %v322
        %v324 = vmul.f32 %v322, %v323
        %vm325 = vcmp.eq.f32.partialorder %v322, inf
        %v326 = vsel %vm325, %v322, %v324
        %vm327 = vcmp.eq.f32.partialorder %v322, 0.0
        %v328 = vand.u32 %v322, 2147483648
        %v329 = vsel %vm327, %v328, %v326
        %s330 = sld [smem:[#allocation4 + %s31]]
        %v331 = vstv %s330
        %v332 = vmul.f32 %v331, %v269
        %s333 = ssub.f32 1.0, %s330
        %v334 = vstv %s333
        %v335 = vmul.f32 %v334, %v305
        %v336 = vadd.f32 %v332, %v335
        %v337 = vmul.f32 %v331, %v293
        %v338 = vmul.f32 %v334, %v329
        %v339 = vadd.f32 %v337, %v338
        %v340 = vrcp.pop %v293
        %v341 = vmul.f32 %v339, %v340
        %v342 = vmul.f32 %v269, %v341
        %v343 = vsub.f32 %v336, %v342
        %v344 = vmul.f32 %v254, %v341
        %v345 = vmul.f32 %v255, %v341
        %v346 = vadd.f32 %v344, %v343
        %v347 = vadd.f32 %v345, %v343
        %348 = vst [vmem:[%s252] sm:$0xff] %v346
        %349 = vst [vmem:[%s252 + $0x8] sm:$0xff] %v347
        %s350 = sand.u32 %s114, 1
        %s351 = scalar_lea.sflag [#allocation6], %s350
        %s352 = sand.u32 %s114, 1
        %s353 = smul.addr %s352, 16
        %s354 = scalar_lea.vmem [#allocation11], %s353
        // Predicated region
        $region45: #{mixstyle_mix.1} parent=31 // pred_check
          %p355 = pneg %p124
        $region46: #{mixstyle_mix.1} parent=31 // pred_check_branch
          %357 = sbr.rel (%p355) target = $region48
        $region47: #{mixstyle_mix.1} parent=31 // pred_region
          %s359 = ssub.s32 256, 256
          %360 = vsyncadd %s351, %s359
          %s361 = smul.addr %s31, 2
          %s362 = smul.addr %s361, 128
          %s363 = scalar_lea.hbm %s4, %s362
          %s364 = sshll.u32 %s354, 4
          %s365 = int_to_ptr.vmem [resolvable:$true] %s364
          %370 = dma.vmem_to_hbm [thread:$0]  %s365, 256, %s363, %s351, 128, 128, 8
        $region48: #{mixstyle_mix.1} parent=31 // pred_fallthru
          _
      $region32: #{mixstyle_mix.1} parent=5 // pred_fallthru
        _
      %p371 = scmp.le.s32.totalorder 2, %s26
      // Predicated region
      $region49: #{mixstyle_mix.1} parent=5 // pred_check
        %p372 = pneg %p371
      $region50: #{mixstyle_mix.1} parent=5 // pred_check_branch
        %374 = sbr.rel (%p372) target = $region52
      $region51: #{mixstyle_mix.1} parent=5 // pred_region
        %s375 = ssub.s32 %s26, 2
        // Predicated region
        $region53: #{mixstyle_mix.1} parent=51 // pred_check
          %p376 = pneg %p130
        $region54: #{mixstyle_mix.1} parent=51 // pred_check_branch
          %378 = sbr.rel (%p376) target = $region56
        $region55: #{mixstyle_mix.1} parent=51 // pred_region
          %s379 = sand.u32 %s115, 1
          %s380 = scalar_lea.sflag [#allocation6], %s379
          %s381 = sand.u32 %s115, 1
          %s382 = smul.addr %s381, 16
          %s383 = scalar_lea.vmem [#allocation11], %s382
          %384 = dma.done %s380, 256
        $region56: #{mixstyle_mix.1} parent=51 // pred_fallthru
          _
      $region52: #{mixstyle_mix.1} parent=5 // pred_fallthru
        _
    $region6: #{mixstyle_mix.1} parent=1 // loop_footer
      %s30 = sadd.s32 1, %s26
    $region7: #{mixstyle_mix.1} parent=1 // loop_footer_branch
      %25 = sbr.rel target = $region3
    $region8: #{mixstyle_mix.1} parent=1 // loop_exit
      _
    %385 = vsyncpa [#allocation5], 1
    %s386 = scalar_lea.sflag [#allocation5], 1
    %387 = vsyncpa %s386, 1
    %388 = vsyncpa [#allocation10], 1
    %s389 = scalar_lea.sflag [#allocation10], 1
    %390 = vsyncpa %s389, 1
    %391 = vsyncpa [#allocation6], 1
    %s392 = scalar_lea.sflag [#allocation6], 1
    %393 = vsyncpa %s392, 1
    %394 = vsyncpa [#allocation7], 1
    %s395 = scalar_lea.sflag [#allocation7], 1
    %396 = vsyncpa %s395, 1

</llo_original>
